<compile_context>
chip_gen: v6e
topology: v6e:2x2x1
jax: 0.10.0
libtpu: 0.0.40
codegen_flags: <defaults>
</compile_context>

<pallas_src>
import math
import functools

import jax
import jax.numpy as jnp
from jax import lax
from jax.experimental import pallas as pl
from jax.experimental.pallas import tpu as pltpu


# ----------------------------------------------------------------------------
# Kernel 1: sequence-length projection of K and V (Linformer E/F matmuls),
# chunked over kv_len and accumulated in f32 scratch.
# ----------------------------------------------------------------------------
def _project_kernel(kT_ref, v_ref, mask_ref, pk_ref, pvT_ref,
                    kpT_ref, vp_ref, kpT_acc, vp_acc):
    ci = pl.program_id(1)

    @pl.when(ci == 0)
    def _():
        kpT_acc[...] = jnp.zeros_like(kpT_acc)
        vp_acc[...] = jnp.zeros_like(vp_acc)

    m = mask_ref[...]                  # (1, ckv): sublane broadcast, no relayout
    k_m = kT_ref[...] * m              # (HD, ckv)      masked K^T chunk
    pv_m = pvT_ref[...] * m            # (k_proj, ckv)  masked proj_v^T chunk

    # kpT += K^T_chunk @ proj_k_chunk   -> (HD, k_proj)  == per-head K_proj^T
    kpT_acc[...] += jnp.dot(k_m, pk_ref[...], preferred_element_type=jnp.float32)
    # vp  += proj_v^T_chunk @ V_chunk   -> (k_proj, HD)
    vp_acc[...] += jnp.dot(pv_m, v_ref[...], preferred_element_type=jnp.float32)

    @pl.when(ci == pl.num_programs(1) - 1)
    def _():
        kpT_ref[...] = kpT_acc[...].astype(kpT_ref.dtype)
        vp_ref[...] = vp_acc[...].astype(vp_ref.dtype)


# ----------------------------------------------------------------------------
# Kernel 2: per-(batch, q-block) attention over the projected K/V.
# ----------------------------------------------------------------------------
def _attn_kernel(q_ref, kpT_ref, vp_ref, out_ref, *opt_probs,
                 num_heads, head_dim, k_proj_dim, scale, approx_recip):
    probs_ref = opt_probs[0] if opt_probs else None

    # Static head loop with ref-level slices: each iteration loads only one
    # head's tiles and its values die at that head's stores, so vreg pressure
    # stays bounded without dynamic lane-dim slicing.
    for hi in range(num_heads):
        d0 = hi * head_dim
        qh = q_ref[:, d0:d0 + head_dim]            # (bq, d_h)
        kpT_h = kpT_ref[d0:d0 + head_dim, :]       # (d_h, k_proj): plain MXU RHS
        vp_h = vp_ref[:, d0:d0 + head_dim]         # (k_proj, d_h)

        scores = jnp.dot(qh, kpT_h, preferred_element_type=jnp.float32) * scale
        s_max = jnp.max(scores, axis=-1, keepdims=True)
        e = jnp.exp(scores - s_max)
        denom = jnp.sum(e, axis=-1, keepdims=True)
        probs = e * pl.reciprocal(denom, approx=approx_recip)
        # TODO(synk): dropout is a no-op here (module default rate 0.0).

        out_h = jnp.dot(probs.astype(vp_h.dtype), vp_h,
                        preferred_element_type=jnp.float32)

        out_ref[:, d0:d0 + head_dim] = out_h.astype(out_ref.dtype)
        if probs_ref is not None:
            p0 = hi * k_proj_dim
            probs_ref[:, p0:p0 + k_proj_dim] = probs.astype(probs_ref.dtype)


# ----------------------------------------------------------------------------
# Wrapper
# ----------------------------------------------------------------------------
def _vmem_capacity_bytes():
    try:
        return int(pltpu.get_tpu_info().vmem_capacity_bytes)
    except Exception:
        return 128 * 1024 * 1024


def _choose_block(total, prefer, mult):
    """Largest block <= prefer that divides `total` and is a multiple of `mult`
    (falls back to the full extent, which always satisfies the tiling rule)."""
    if total <= prefer:
        return total
    c = (prefer // mult) * mult
    while c >= mult:
        if total % c == 0:
            return c
        c -= mult
    return total


def linformer_attention(q, k, v, proj_k, proj_v, padding_mask=None, *,
                        compute_dtype=None, probs_dtype=jnp.float32,
                        return_probs=True, approx_softmax_recip=False,
                        block_q=None, kv_chunk=None):
    """
    q, k, v:        (b, h, seq, d_h)
    proj_k, proj_v: (max_seq_len, k_proj)   (pass proj_k twice for share_kv=True)
    padding_mask:   (b, kv_len), 1 = keep, 0 = pad (optional)

    Returns:
        out:   (b, h, q_len, d_h)      in q.dtype
        probs: (b, h, q_len, k_proj)   in probs_dtype (None if return_probs=False)
    """
    b, h, q_len, d_h = q.shape
    _, _, kv_len, _ = k.shape
    k_proj_dim = proj_k.shape[1]
    assert kv_len <= proj_k.shape[0]
    HD = h * d_h

    cdtype = jnp.dtype(compute_dtype) if compute_dtype is not None else jnp.dtype(q.dtype)
    itm = cdtype.itemsize
    out_itm = jnp.dtype(q.dtype).itemsize
    probs_itm = jnp.dtype(probs_dtype).itemsize

    vmem_cap = _vmem_capacity_bytes()               # 64 MiB v7x, 128 MiB v5e/v6e
    budget = int(min(vmem_cap * 0.8, 100 << 20))

    # ---- lane-dense layouts: heads fused into the last (lane) axis ----
    q_r = jnp.transpose(q, (0, 2, 1, 3)).reshape(b, q_len, HD).astype(cdtype)
    # K pre-transposed so the projection yields (d_h, k_proj) per head directly.
    kT_r = jnp.transpose(k, (0, 1, 3, 2)).reshape(b, HD, kv_len).astype(cdtype)
    v_r = jnp.transpose(v, (0, 2, 1, 3)).reshape(b, kv_len, HD).astype(cdtype)

    pk = proj_k[:kv_len, :].astype(cdtype)                    # (kv_len, k_proj)
    pvT = jnp.transpose(proj_v[:kv_len, :]).astype(cdtype)    # (k_proj, kv_len)

    if padding_mask is None:
        mask3 = jnp.ones((b, 1, kv_len), dtype=cdtype)
    else:
        mask3 = padding_mask.astype(cdtype).reshape(b, 1, kv_len)

    # ---------------- Phase 1: K/V projection over sequence length ----------
    def proj_working(c):
        return (2 * HD * c * itm + 2 * c * HD * itm + 2 * c * itm
                + 2 * c * k_proj_dim * itm + 2 * k_proj_dim * c * itm
                + 2 * HD * k_proj_dim * itm + 2 * k_proj_dim * HD * itm
                + 2 * HD * k_proj_dim * 4)

    if kv_chunk is None:
        prefer_kv = 1024
        while prefer_kv > 128 and proj_working(prefer_kv) > budget:
            prefer_kv //= 2
        ckv = _choose_block(kv_len, prefer_kv, 128)
    else:
        ckv = min(kv_chunk, kv_len)
        assert kv_len % ckv == 0 and (ckv % 128 == 0 or ckv == kv_len)
    n_kv = kv_len // ckv

    proj_vmem = int(min(max(int(proj_working(ckv) * 1.25) + (2 << 20), 16 << 20),
                        budget))

    kpT, vp = pl.pallas_call(
        _project_kernel,
        out_shape=(jax.ShapeDtypeStruct((b, HD, k_proj_dim), cdtype),
                   jax.ShapeDtypeStruct((b, k_proj_dim, HD), cdtype)),
        grid_spec=pltpu.PrefetchScalarGridSpec(
            num_scalar_prefetch=0,
            grid=(b, n_kv),
            in_specs=[
                pl.BlockSpec((None, HD, ckv), lambda bi, ci: (bi, 0, ci)),   # K^T
                pl.BlockSpec((None, ckv, HD), lambda bi, ci: (bi, ci, 0)),   # V
                pl.BlockSpec((None, 1, ckv), lambda bi, ci: (bi, 0, ci)),    # mask
                pl.BlockSpec((ckv, k_proj_dim), lambda bi, ci: (ci, 0)),     # proj_k
                pl.BlockSpec((k_proj_dim, ckv), lambda bi, ci: (0, ci)),     # proj_v^T
            ],
            out_specs=[
                pl.BlockSpec((None, HD, k_proj_dim), lambda bi, ci: (bi, 0, 0)),
                pl.BlockSpec((None, k_proj_dim, HD), lambda bi, ci: (bi, 0, 0)),
            ],
            scratch_shapes=[pltpu.VMEM((HD, k_proj_dim), jnp.float32),
                            pltpu.VMEM((k_proj_dim, HD), jnp.float32)]),
        compiler_params=pltpu.CompilerParams(
            dimension_semantics=("parallel", "arbitrary"),
            vmem_limit_bytes=proj_vmem),
    )(kT_r, v_r, mask3, pk, pvT)

    # ---------------- Phase 2: attention over projected K/V -----------------
    def attn_working(bq_):
        w = (2 * bq_ * HD * itm + 2 * HD * k_proj_dim * itm
             + 2 * k_proj_dim * HD * itm + 2 * bq_ * HD * out_itm
             + 4 * bq_ * max(k_proj_dim, 128) * 4)        # scores/exp headroom
        if return_probs:
            w += 2 * bq_ * h * k_proj_dim * probs_itm
        return w

    if block_q is None:
        prefer_q = 512 if vmem_cap >= (100 << 20) else 256
        while prefer_q > 8 and attn_working(prefer_q) > budget:
            prefer_q //= 2
        bq = _choose_block(q_len, prefer_q, 8)
    else:
        bq = min(block_q, q_len)
        assert q_len % bq == 0 and (bq % 8 == 0 or bq == q_len)
    nq = q_len // bq

    attn_vmem = int(min(max(int(attn_working(bq) * 1.25) + (2 << 20), 16 << 20),
                        budget))

    kernel = functools.partial(
        _attn_kernel, num_heads=h, head_dim=d_h, k_proj_dim=k_proj_dim,
        scale=1.0 / math.sqrt(d_h), approx_recip=approx_softmax_recip)

    out_shapes = [jax.ShapeDtypeStruct((b, q_len, HD), q.dtype)]
    out_specs = [pl.BlockSpec((None, bq, HD), lambda bi, qi: (bi, qi, 0))]
    if return_probs:
        out_shapes.append(
            jax.ShapeDtypeStruct((b, q_len, h * k_proj_dim), probs_dtype))
        out_specs.append(
            pl.BlockSpec((None, bq, h * k_proj_dim), lambda bi, qi: (bi, qi, 0)))

    results = pl.pallas_call(
        kernel,
        out_shape=tuple(out_shapes),
        grid_spec=pltpu.PrefetchScalarGridSpec(
            num_scalar_prefetch=0,
            grid=(b, nq),
            in_specs=[
                pl.BlockSpec((None, bq, HD), lambda bi, qi: (bi, qi, 0)),          # q
                pl.BlockSpec((None, HD, k_proj_dim), lambda bi, qi: (bi, 0, 0)),   # kpT
                pl.BlockSpec((None, k_proj_dim, HD), lambda bi, qi: (bi, 0, 0)),   # vp
            ],
            out_specs=out_specs),
        compiler_params=pltpu.CompilerParams(
            # Every (batch, q-block) step is independent: both axes parallel so
            # v7x megacore is used even at batch == 1.
            dimension_semantics=("parallel", "parallel"),
            vmem_limit_bytes=attn_vmem),
    )(q_r, kpT, vp)

    if isinstance(results, (tuple, list)):
        out_r = results[0]
        probs_r = results[1] if return_probs else None
    else:
        out_r, probs_r = results, None

    # Layout plumbing back to the PyTorch (b, h, q_len, ...) convention.
    out = jnp.transpose(out_r.reshape(b, q_len, h, d_h), (0, 2, 1, 3))
    if not return_probs:
        return out, None
    probs = jnp.transpose(probs_r.reshape(b, q_len, h, k_proj_dim), (0, 2, 1, 3))
    return out, probs


# ----------------------------------------------------------------------------
# Pure-JAX reference matching the PyTorch forward.
# ----------------------------------------------------------------------------
def _reference(q, k, v, proj_k, proj_v, mask):
    b, h, q_len, d_h = q.shape
    kv_len = k.shape[2]
    pk = proj_k[:kv_len]
    pv = proj_v[:kv_len]
    if mask is not None:
        m = mask[:, None, :, None].astype(k.dtype)
        k = k * m
        v = v * m
    k_p = jnp.einsum('bhnd,nk->bhkd', k, pk)
    v_p = jnp.einsum('bhnd,nk->bhkd', v, pv)
    scores = jnp.einsum('bhqd,bhkd->bhqk', q, k_p) / math.sqrt(d_h)
    probs = jax.nn.softmax(scores, axis=-1)
    out = jnp.einsum('bhqk,bhkd->bhqd', probs, v_p)
    return out, probs


if __name__ == "__main__":
    # Small deterministic config.
    batch, heads, seq_len, head_dim = 2, 2, 16, 8
    k_proj_dim = 8          # Linformer projected dimension "k"
    max_seq_len = seq_len   # module's sequence_length

    key = jax.random.PRNGKey(0)
    kq, kk, kv_, kpk, kpv, kmask = jax.random.split(key, 6)

    q = jax.random.normal(kq, (batch, heads, seq_len, head_dim), dtype=jnp.float32)
    k = jax.random.normal(kk, (batch, heads, seq_len, head_dim), dtype=jnp.float32)
    v = jax.random.normal(kv_, (batch, heads, seq_len, head_dim), dtype=jnp.float32)

    # Parameter init mirroring _init_proj: uniform(-1/sqrt(k), 1/sqrt(k)).
    std = 1.0 / math.sqrt(k_proj_dim)
    proj_k = jax.random.uniform(kpk, (max_seq_len, k_proj_dim),
                                minval=-std, maxval=std, dtype=jnp.float32)
    proj_v = jax.random.uniform(kpv, (max_seq_len, k_proj_dim),
                                minval=-std, maxval=std, dtype=jnp.float32)

    # Padding mask: last two kv positions of batch 1 padded out.
    mask = jnp.ones((batch, seq_len), dtype=jnp.float32)
    mask = mask.at[1, -2:].set(0.0)

    # ---- f32 parity path (matches the PyTorch forward) ----
    out, probs = linformer_attention(q, k, v, proj_k, proj_v, mask)
    out = jax.block_until_ready(out)
    probs = jax.block_until_ready(probs)

    ref_out, ref_probs = _reference(q, k, v, proj_k, proj_v, mask)
    assert out.shape == (batch, heads, seq_len, head_dim)
    assert probs.shape == (batch, heads, seq_len, k_proj_dim)
    assert jnp.allclose(out, ref_out, atol=1e-5, rtol=1e-5)
    assert jnp.allclose(probs, ref_probs, atol=1e-5, rtol=1e-5)

    # ---- bf16 + approx-reciprocal fast path, probs skipped (perf config) ----
    out_b, probs_b = linformer_attention(q, k, v, proj_k, proj_v, mask,
                                         compute_dtype=jnp.bfloat16,
                                         approx_softmax_recip=True,
                                         return_probs=False)
    out_b = jax.block_until_ready(out_b)
    assert probs_b is None
    assert jnp.allclose(out_b.astype(jnp.float32), ref_out, atol=1e-1, rtol=1e-1)

    print("KERNEL_OK")
</pallas_src>

<mosaic_0001>
module attributes {stable_mosaic.version = 11 : i64} {
  func.func @_project_kernel(%arg0: i32, %arg1: i32, %arg2: memref<1x16x16xf32, #tpu.memory_space<vmem>>, %arg3: memref<1x16x16xf32, #tpu.memory_space<vmem>>, %arg4: memref<1x1x16xf32, #tpu.memory_space<vmem>>, %arg5: memref<16x8xf32, #tpu.memory_space<vmem>>, %arg6: memref<8x16xf32, #tpu.memory_space<vmem>>, %arg7: memref<1x16x8xf32, #tpu.memory_space<vmem>>, %arg8: memref<1x8x16xf32, #tpu.memory_space<vmem>>, %arg9: memref<16x8xf32, #tpu.memory_space<vmem>>, %arg10: memref<8x16xf32, #tpu.memory_space<vmem>>) attributes {dimension_semantics = [#tpu.dimension_semantics<parallel>, #tpu.dimension_semantics<arbitrary>], iteration_bounds = array<i64: 2, 1>, scalar_prefetch = 0 : i64, scratch_operands = 2 : i64, tpu.core_type = #tpu.core_type<tc>, window_params = [{transform_indices = @transform_0, window_bounds = array<i64: 1, 16, 16>}, {transform_indices = @transform_1, window_bounds = array<i64: 1, 16, 16>}, {transform_indices = @transform_2, window_bounds = array<i64: 1, 1, 16>}, {transform_indices = @transform_3, window_bounds = array<i64: 16, 8>}, {transform_indices = @transform_4, window_bounds = array<i64: 8, 16>}, {transform_indices = @transform_5, window_bounds = array<i64: 1, 16, 8>}, {transform_indices = @transform_6, window_bounds = array<i64: 1, 8, 16>}]} {
    %c0_i32 = arith.constant 0 : i32
    %0 = arith.cmpi eq, %arg1, %c0_i32 : i32
    %1 = arith.extui %0 : i1 to i32
    %c0_i32_0 = arith.constant 0 : i32
    %2 = arith.cmpi ne, %1, %c0_i32_0 : i32
    scf.if %2 {
      %cst_24 = arith.constant 0.000000e+00 : f32
      %26 = vector.broadcast %cst_24 : f32 to vector<16x8xf32>
      %c0_25 = arith.constant 0 : index
      %c0_26 = arith.constant 0 : index
      %27 = vector.load %arg9[%c0_25, %c0_26] : memref<16x8xf32, #tpu.memory_space<vmem>>, vector<16x8xf32>
      tpu.vector_store %arg9[%c0_25, %c0_26], %26 {strides = array<i32>} : memref<16x8xf32, #tpu.memory_space<vmem>>, vector<16x8xf32>,
      %cst_27 = arith.constant 0.000000e+00 : f32
      %28 = vector.broadcast %cst_27 : f32 to vector<8x16xf32>
      %c0_28 = arith.constant 0 : index
      %c0_29 = arith.constant 0 : index
      %29 = vector.load %arg10[%c0_28, %c0_29] : memref<8x16xf32, #tpu.memory_space<vmem>>, vector<8x16xf32>
      tpu.vector_store %arg10[%c0_28, %c0_29], %28 {strides = array<i32>} : memref<8x16xf32, #tpu.memory_space<vmem>>, vector<8x16xf32>,
    } else {
    }
    %c0 = arith.constant 0 : index
    %c0_1 = arith.constant 0 : index
    %c0_2 = arith.constant 0 : index
    %3 = vector.load %arg4[%c0, %c0_1, %c0_2] : memref<1x1x16xf32, #tpu.memory_space<vmem>>, vector<1x1x16xf32>
    %4 = vector.shape_cast %3 : vector<1x1x16xf32> to vector<1x16xf32>
    %c0_3 = arith.constant 0 : index
    %c0_4 = arith.constant 0 : index
    %c0_5 = arith.constant 0 : index
    %5 = vector.load %arg2[%c0_3, %c0_4, %c0_5] : memref<1x16x16xf32, #tpu.memory_space<vmem>>, vector<1x16x16xf32>
    %6 = vector.shape_cast %5 : vector<1x16x16xf32> to vector<16x16xf32>
    %7 = vector.broadcast %4 : vector<1x16xf32> to vector<16x16xf32>
    %8 = arith.mulf %6, %7 : vector<16x16xf32>
    %c0_6 = arith.constant 0 : index
    %c0_7 = arith.constant 0 : index
    %9 = vector.load %arg6[%c0_6, %c0_7] : memref<8x16xf32, #tpu.memory_space<vmem>>, vector<8x16xf32>
    %10 = vector.broadcast %4 : vector<1x16xf32> to vector<8x16xf32>
    %11 = arith.mulf %9, %10 : vector<8x16xf32>
    %c0_8 = arith.constant 0 : index
    %c0_9 = arith.constant 0 : index
    %12 = vector.load %arg9[%c0_8, %c0_9] : memref<16x8xf32, #tpu.memory_space<vmem>>, vector<16x8xf32>
    %c0_10 = arith.constant 0 : index
    %c0_11 = arith.constant 0 : index
    %13 = vector.load %arg5[%c0_10, %c0_11] : memref<16x8xf32, #tpu.memory_space<vmem>>, vector<16x8xf32>
    %cst = arith.constant dense<0.000000e+00> : vector<16x8xf32>
    %14 = tpu.matmul %8, %13, %cst {dimension_numbers = #tpu.dot_dimension_numbers<[1], [0], [0], [1], [0, 0, 1, 1], [], []>} : vector<16x16xf32>, vector<16x8xf32>, vector<16x8xf32> -> vector<16x8xf32>
    %15 = arith.addf %12, %14 : vector<16x8xf32>
    %c0_12 = arith.constant 0 : index
    %c0_13 = arith.constant 0 : index
    %16 = vector.load %arg9[%c0_12, %c0_13] : memref<16x8xf32, #tpu.memory_space<vmem>>, vector<16x8xf32>
    tpu.vector_store %arg9[%c0_12, %c0_13], %15 {strides = array<i32>} : memref<16x8xf32, #tpu.memory_space<vmem>>, vector<16x8xf32>,
    %c0_14 = arith.constant 0 : index
    %c0_15 = arith.constant 0 : index
    %17 = vector.load %arg10[%c0_14, %c0_15] : memref<8x16xf32, #tpu.memory_space<vmem>>, vector<8x16xf32>
    %c0_16 = arith.constant 0 : index
    %c0_17 = arith.constant 0 : index
    %c0_18 = arith.constant 0 : index
    %18 = vector.load %arg3[%c0_16, %c0_17, %c0_18] : memref<1x16x16xf32, #tpu.memory_space<vmem>>, vector<1x16x16xf32>
    %19 = vector.shape_cast %18 : vector<1x16x16xf32> to vector<16x16xf32>
    %cst_19 = arith.constant dense<0.000000e+00> : vector<8x16xf32>
    %20 = tpu.matmul %11, %19, %cst_19 {dimension_numbers = #tpu.dot_dimension_numbers<[1], [0], [0], [1], [0, 0, 1, 1], [], []>} : vector<8x16xf32>, vector<16x16xf32>, vector<8x16xf32> -> vector<8x16xf32>
    %21 = arith.addf %17, %20 : vector<8x16xf32>
    %c0_20 = arith.constant 0 : index
    %c0_21 = arith.constant 0 : index
    %22 = vector.load %arg10[%c0_20, %c0_21] : memref<8x16xf32, #tpu.memory_space<vmem>>, vector<8x16xf32>
    tpu.vector_store %arg10[%c0_20, %c0_21], %21 {strides = array<i32>} : memref<8x16xf32, #tpu.memory_space<vmem>>, vector<8x16xf32>,
    %c0_i32_22 = arith.constant 0 : i32
    %23 = arith.cmpi eq, %arg1, %c0_i32_22 : i32
    %24 = arith.extui %23 : i1 to i32
    %c0_i32_23 = arith.constant 0 : i32
    %25 = arith.cmpi ne, %24, %c0_i32_23 : i32
    scf.if %25 {
      %c0_24 = arith.constant 0 : index
      %c0_25 = arith.constant 0 : index
      %26 = vector.load %arg9[%c0_24, %c0_25] : memref<16x8xf32, #tpu.memory_space<vmem>>, vector<16x8xf32>
      %c0_26 = arith.constant 0 : index
      %c0_27 = arith.constant 0 : index
      %c0_28 = arith.constant 0 : index
      %27 = vector.load %arg7[%c0_26, %c0_27, %c0_28] : memref<1x16x8xf32, #tpu.memory_space<vmem>>, vector<1x16x8xf32>
      %28 = vector.shape_cast %27 : vector<1x16x8xf32> to vector<16x8xf32>
      %29 = vector.shape_cast %26 : vector<16x8xf32> to vector<1x16x8xf32>
      tpu.vector_store %arg7[%c0_26, %c0_27, %c0_28], %29 {strides = array<i32>} : memref<1x16x8xf32, #tpu.memory_space<vmem>>, vector<1x16x8xf32>,
      %c0_29 = arith.constant 0 : index
      %c0_30 = arith.constant 0 : index
      %30 = vector.load %arg10[%c0_29, %c0_30] : memref<8x16xf32, #tpu.memory_space<vmem>>, vector<8x16xf32>
      %c0_31 = arith.constant 0 : index
      %c0_32 = arith.constant 0 : index
      %c0_33 = arith.constant 0 : index
      %31 = vector.load %arg8[%c0_31, %c0_32, %c0_33] : memref<1x8x16xf32, #tpu.memory_space<vmem>>, vector<1x8x16xf32>
      %32 = vector.shape_cast %31 : vector<1x8x16xf32> to vector<8x16xf32>
      %33 = vector.shape_cast %30 : vector<8x16xf32> to vector<1x8x16xf32>
      tpu.vector_store %arg8[%c0_31, %c0_32, %c0_33], %33 {strides = array<i32>} : memref<1x8x16xf32, #tpu.memory_space<vmem>>, vector<1x8x16xf32>,
    } else {
    }
    return
  }
  func.func @transform_0(%arg0: i32, %arg1: i32) -> (i32, i32, i32) {
    %c0_i32 = arith.constant 0 : i32
    %c0_i32_0 = arith.constant 0 : i32
    return %arg0, %c0_i32, %arg1 : i32, i32, i32
  }
  func.func @transform_1(%arg0: i32, %arg1: i32) -> (i32, i32, i32) {
    %c0_i32 = arith.constant 0 : i32
    %c0_i32_0 = arith.constant 0 : i32
    return %arg0, %arg1, %c0_i32 : i32, i32, i32
  }
  func.func @transform_2(%arg0: i32, %arg1: i32) -> (i32, i32, i32) {
    %c0_i32 = arith.constant 0 : i32
    %c0_i32_0 = arith.constant 0 : i32
    return %arg0, %c0_i32, %arg1 : i32, i32, i32
  }
  func.func @transform_3(%arg0: i32, %arg1: i32) -> (i32, i32) {
    %c0_i32 = arith.constant 0 : i32
    %c0_i32_0 = arith.constant 0 : i32
    return %arg1, %c0_i32 : i32, i32
  }
  func.func @transform_4(%arg0: i32, %arg1: i32) -> (i32, i32) {
    %c0_i32 = arith.constant 0 : i32
    %c0_i32_0 = arith.constant 0 : i32
    return %c0_i32, %arg1 : i32, i32
  }
  func.func @transform_5(%arg0: i32, %arg1: i32) -> (i32, i32, i32) {
    %c0_i32 = arith.constant 0 : i32
    %c0_i32_0 = arith.constant 0 : i32
    %c0_i32_1 = arith.constant 0 : i32
    return %arg0, %c0_i32, %c0_i32_0 : i32, i32, i32
  }
  func.func @transform_6(%arg0: i32, %arg1: i32) -> (i32, i32, i32) {
    %c0_i32 = arith.constant 0 : i32
    %c0_i32_0 = arith.constant 0 : i32
    %c0_i32_1 = arith.constant 0 : i32
    return %arg0, %c0_i32, %c0_i32_0 : i32, i32, i32
  }
}

</mosaic_0001>

<llo_original>
// kernel: tpu_custom_call.1
$region0: #{tpu_custom_call.1}
  #allocation0 [shape = 'u32[]', space=smem, size = 0x4, offset = 0x4, fixed_abs, tag = 'smem constant byte address 0x4 - core index']
  #allocation1 [shape = 'u32[144,128]{1,0:T(1,128)}', space=vmem, size = 0x12000, scoped, tag = 'internal scratch']
  #allocation2 [shape = 'f32[16,8]{1,0:T(8,128)}', space=vmem, size = 0x2000, scoped, tag = 'scratch operand']
  #allocation3 [shape = 'f32[8,16]{1,0:T(8,128)}', space=vmem, size = 0x1000, scoped, tag = 'scratch operand']
  %s0 = inlined_call_operand.hbm [shape: f32[2,16,16], index: 0, kind: input, shape index: {}]
  %s1 = inlined_call_operand.hbm [shape: f32[2,16,16], index: 1, kind: input, shape index: {}]
  %s2 = inlined_call_operand.vmem [shape: f32[2,1,16], index: 2, kind: input, shape index: {}]
  %s3 = inlined_call_operand.vmem [shape: f32[16,8], index: 3, kind: input, shape index: {}]
  %s4 = inlined_call_operand.vmem [shape: f32[8,16], index: 4, kind: input, shape index: {}]
  %s5 = inlined_call_operand.vmem [shape: f32[2,16,8], index: 5, kind: output, shape index: {0}]
  %s6 = inlined_call_operand.hbm [shape: f32[2,8,16], index: 6, kind: output, shape index: {1}]
  %7 = xla_tuple %s5, %s6
  %s8 = sld [smem:[#allocation0]]
  $region77: #{tpu_custom_call.1} parent=0
    _
  %s10 = ssub.s32 1, %s8
  %s11 = scalar_select 0, %s10, %s8
  $region1: #{tpu_custom_call.1} parent=0
    #allocation4 [shape = 'u8[16384]{0}', space=vmem, size = 0x4000, scoped, tag = 'input window, operand 0']
    #allocation5 [shape = 's32[2]{0}', space=sflag, size = 0x8, scoped, tag = 'scoped memory for tpu_custom_call.1']
    #allocation6 [shape = 's32[2]{0}', space=sflag, size = 0x8, scoped, tag = 'scoped memory for tpu_custom_call.1']
    #allocation7 [shape = 'u8[16384]{0}', space=vmem, size = 0x4000, scoped, tag = 'input window, operand 1']
    #allocation8 [shape = 's32[2]{0}', space=sflag, size = 0x8, scoped, tag = 'scoped memory for tpu_custom_call.1']
    #allocation9 [shape = 'u8[8192]{0}', space=vmem, size = 0x2000, scoped, tag = 'output window, operand 1']
    %12 = vsyncpa [#allocation5], 0
    %s13 = scalar_lea.sflag [#allocation5], 1
    %14 = vsyncpa %s13, 0
    %15 = vsyncpa [#allocation8], 0
    %s16 = scalar_lea.sflag [#allocation8], 1
    %17 = vsyncpa %s16, 0
    %18 = vsyncpa [#allocation6], 0
    %s19 = scalar_lea.sflag [#allocation6], 1
    %20 = vsyncpa %s19, 0
    loop: start=0, step=1, limit=4
    $region2: #{tpu_custom_call.1} parent=1 // loop_pre_header
      _
    $region3: #{tpu_custom_call.1} parent=1 // loop_header
      %s22 = sphi 0, %s26
      %p23 = scmp.ge.s32.totalorder %s22, 4
      %s29 = sphi 0, %s41
      %s30 = sphi 0, %s37
      %s31 = sphi 0, %s29
      %s32 = sphi 0, %s30
      %s33 = sphi 0, %s31
      %s34 = sphi 0, %s32
      %s46 = sphi 0, %s48
      %s49 = sphi 0, %s46
      %s50 = sphi 0, %s49
      %s66 = sphi 0, %s50
      %s74 = sphi 0, %s76
      %s77 = sphi 0, %s74
      %s78 = sphi 0, %s77
      %s94 = sphi 0, %s78
      %s102 = sphi 0, %s104
      %s105 = sphi 0, %s102
      %s106 = sphi 0, %s105
      %s122 = sphi 0, %s106
      %s128 = sphi 0, %s130
      %s131 = sphi 0, %s128
      %s132 = sphi 0, %s131
      %s148 = sphi 0, %s132
      %s154 = sphi 0, %s156
      %s157 = sphi 0, %s154
      %s158 = sphi 0, %s157
      %s174 = sphi 0, %s158
      %s180 = sphi 0, %s182
      %s183 = sphi 0, %s180
      %s184 = sphi 0, %s183
      %s200 = sphi 0, %s184
      %s206 = sphi 0, %s208
      %s209 = sphi 0, %s206
      %s210 = sphi 0, %s209
      %s226 = sphi 0, %s210
    $region4: #{tpu_custom_call.1} parent=1 // loop_header_branch
      %25 = sbr.rel (%p23) target = $region8
    $region5: #{tpu_custom_call.1} parent=1 // loop_body
      %s27 = ssub.s32 %s22, 1
      %s28 = ssub.s32 %s22, 2
      %s35 = sadd.s32 1, %s30
      %p36 = scmp.ge.s32.totalorder %s35, 1
      %s37 = scalar_select %p36, 0, %s35
      %s38 = sadd.s32 1, %s29
      %s39 = scalar_select %p36, %s38, %s29
      %p40 = scmp.ge.s32.totalorder %s39, 2
      %s41 = scalar_select %p40, 0, %s39
      %s42 = ssub.s32 %s29, %s41
      %s43 = ssub.s32 %s30, %s37
      %s44 = sor.u32 %s42, %s43
      %p45 = scmp.eq.s32.totalorder %s44, 0
      %s47 = sadd.s32 %s46, 1
      %s48 = scalar_select %p45, %s46, %s47
      %p51 = pneg %p45
      %p52 = scmp.eq.s32.totalorder %s22, 1
      %p53 = por %p51, %p52
      %p54 = scmp.ne.s32.totalorder %s46, %s49
      %p55 = scmp.eq.s32.totalorder %s22, 0
      %p56 = por %p54, %p55
      %p57 = scmp.ne.s32.totalorder %s46, %s49
      %p58 = scmp.eq.s32.totalorder %s27, 1
      %p59 = por %p57, %p58
      %p60 = scmp.ne.s32.totalorder %s49, %s50
      %p61 = scmp.eq.s32.totalorder %s27, 0
      %p62 = por %p60, %p61
      %p63 = scmp.ne.s32.totalorder %s49, %s50
      %p64 = scmp.eq.s32.totalorder %s28, 1
      %p65 = por %p63, %p64
      %p67 = scmp.ne.s32.totalorder %s50, %s66
      %p68 = scmp.eq.s32.totalorder %s28, 0
      %p69 = por %p67, %p68
      %s70 = ssub.s32 %s29, %s41
      %s71 = ssub.s32 %s30, %s37
      %s72 = sor.u32 %s70, %s71
      %p73 = scmp.eq.s32.totalorder %s72, 0
      %s75 = sadd.s32 %s74, 1
      %s76 = scalar_select %p73, %s74, %s75
      %p79 = pneg %p73
      %p80 = scmp.eq.s32.totalorder %s22, 1
      %p81 = por %p79, %p80
      %p82 = scmp.ne.s32.totalorder %s74, %s77
      %p83 = scmp.eq.s32.totalorder %s22, 0
      %p84 = por %p82, %p83
      %p85 = scmp.ne.s32.totalorder %s74, %s77
      %p86 = scmp.eq.s32.totalorder %s27, 1
      %p87 = por %p85, %p86
      %p88 = scmp.ne.s32.totalorder %s77, %s78
      %p89 = scmp.eq.s32.totalorder %s27, 0
      %p90 = por %p88, %p89
      %p91 = scmp.ne.s32.totalorder %s77, %s78
      %p92 = scmp.eq.s32.totalorder %s28, 1
      %p93 = por %p91, %p92
      %p95 = scmp.ne.s32.totalorder %s78, %s94
      %p96 = scmp.eq.s32.totalorder %s28, 0
      %p97 = por %p95, %p96
      %s98 = ssub.s32 %s29, %s41
      %s99 = ssub.s32 %s30, %s37
      %s100 = sor.u32 %s98, %s99
      %p101 = scmp.eq.s32.totalorder %s100, 0
      %s103 = sadd.s32 %s102, 1
      %s104 = scalar_select %p101, %s102, %s103
      %p107 = pneg %p101
      %p108 = scmp.eq.s32.totalorder %s22, 1
      %p109 = por %p107, %p108
      %p110 = scmp.ne.s32.totalorder %s102, %s105
      %p111 = scmp.eq.s32.totalorder %s22, 0
      %p112 = por %p110, %p111
      %p113 = scmp.ne.s32.totalorder %s102, %s105
      %p114 = scmp.eq.s32.totalorder %s27, 1
      %p115 = por %p113, %p114
      %p116 = scmp.ne.s32.totalorder %s105, %s106
      %p117 = scmp.eq.s32.totalorder %s27, 0
      %p118 = por %p116, %p117
      %p119 = scmp.ne.s32.totalorder %s105, %s106
      %p120 = scmp.eq.s32.totalorder %s28, 1
      %p121 = por %p119, %p120
      %p123 = scmp.ne.s32.totalorder %s106, %s122
      %p124 = scmp.eq.s32.totalorder %s28, 0
      %p125 = por %p123, %p124
      %s126 = ssub.s32 %s30, %s37
      %p127 = scmp.eq.s32.totalorder %s126, 0
      %s129 = sadd.s32 %s128, 1
      %s130 = scalar_select %p127, %s128, %s129
      %p133 = pneg %p127
      %p134 = scmp.eq.s32.totalorder %s22, 1
      %p135 = por %p133, %p134
      %p136 = scmp.ne.s32.totalorder %s128, %s131
      %p137 = scmp.eq.s32.totalorder %s22, 0
      %p138 = por %p136, %p137
      %p139 = scmp.ne.s32.totalorder %s128, %s131
      %p140 = scmp.eq.s32.totalorder %s27, 1
      %p141 = por %p139, %p140
      %p142 = scmp.ne.s32.totalorder %s131, %s132
      %p143 = scmp.eq.s32.totalorder %s27, 0
      %p144 = por %p142, %p143
      %p145 = scmp.ne.s32.totalorder %s131, %s132
      %p146 = scmp.eq.s32.totalorder %s28, 1
      %p147 = por %p145, %p146
      %p149 = scmp.ne.s32.totalorder %s132, %s148
      %p150 = scmp.eq.s32.totalorder %s28, 0
      %p151 = por %p149, %p150
      %s152 = ssub.s32 %s30, %s37
      %p153 = scmp.eq.s32.totalorder %s152, 0
      %s155 = sadd.s32 %s154, 1
      %s156 = scalar_select %p153, %s154, %s155
      %p159 = pneg %p153
      %p160 = scmp.eq.s32.totalorder %s22, 1
      %p161 = por %p159, %p160
      %p162 = scmp.ne.s32.totalorder %s154, %s157
      %p163 = scmp.eq.s32.totalorder %s22, 0
      %p164 = por %p162, %p163
      %p165 = scmp.ne.s32.totalorder %s154, %s157
      %p166 = scmp.eq.s32.totalorder %s27, 1
      %p167 = por %p165, %p166
      %p168 = scmp.ne.s32.totalorder %s157, %s158
      %p169 = scmp.eq.s32.totalorder %s27, 0
      %p170 = por %p168, %p169
      %p171 = scmp.ne.s32.totalorder %s157, %s158
      %p172 = scmp.eq.s32.totalorder %s28, 1
      %p173 = por %p171, %p172
      %p175 = scmp.ne.s32.totalorder %s158, %s174
      %p176 = scmp.eq.s32.totalorder %s28, 0
      %p177 = por %p175, %p176
      %s178 = ssub.s32 %s29, %s41
      %p179 = scmp.eq.s32.totalorder %s178, 0
      %s181 = sadd.s32 %s180, 1
      %s182 = scalar_select %p179, %s180, %s181
      %p185 = pneg %p179
      %p186 = scmp.eq.s32.totalorder %s22, 1
      %p187 = por %p185, %p186
      %p188 = scmp.ne.s32.totalorder %s180, %s183
      %p189 = scmp.eq.s32.totalorder %s22, 0
      %p190 = por %p188, %p189
      %p191 = scmp.ne.s32.totalorder %s180, %s183
      %p192 = scmp.eq.s32.totalorder %s27, 1
      %p193 = por %p191, %p192
      %p194 = scmp.ne.s32.totalorder %s183, %s184
      %p195 = scmp.eq.s32.totalorder %s27, 0
      %p196 = por %p194, %p195
      %p197 = scmp.ne.s32.totalorder %s183, %s184
      %p198 = scmp.eq.s32.totalorder %s28, 1
      %p199 = por %p197, %p198
      %p201 = scmp.ne.s32.totalorder %s184, %s200
      %p202 = scmp.eq.s32.totalorder %s28, 0
      %p203 = por %p201, %p202
      %s204 = ssub.s32 %s29, %s41
      %p205 = scmp.eq.s32.totalorder %s204, 0
      %s207 = sadd.s32 %s206, 1
      %s208 = scalar_select %p205, %s206, %s207
      %p211 = pneg %p205
      %p212 = scmp.eq.s32.totalorder %s22, 1
      %p213 = por %p211, %p212
      %p214 = scmp.ne.s32.totalorder %s206, %s209
      %p215 = scmp.eq.s32.totalorder %s22, 0
      %p216 = por %p214, %p215
      %p217 = scmp.ne.s32.totalorder %s206, %s209
      %p218 = scmp.eq.s32.totalorder %s27, 1
      %p219 = por %p217, %p218
      %p220 = scmp.ne.s32.totalorder %s209, %s210
      %p221 = scmp.eq.s32.totalorder %s27, 0
      %p222 = por %p220, %p221
      %p223 = scmp.ne.s32.totalorder %s209, %s210
      %p224 = scmp.eq.s32.totalorder %s28, 1
      %p225 = por %p223, %p224
      %p227 = scmp.ne.s32.totalorder %s210, %s226
      %p228 = scmp.eq.s32.totalorder %s28, 0
      %p229 = por %p227, %p228
      %p230 = scmp.le.s32.totalorder 1, %s22
      %p231 = scmp.lt.s32.totalorder %s22, 3
      %p232 = pnand %p230, %p231
      %p233 = pneg %p232
      // Predicated region
      $region9: #{tpu_custom_call.1} parent=5 // pred_check
        _
      $region10: #{tpu_custom_call.1} parent=5 // pred_check_branch
        %235 = sbr.rel (%p232) target = $region12
      $region11: #{tpu_custom_call.1} parent=5 // pred_region
        %s236 = ssub.s32 %s22, 1
        // Predicated region
        $region13: #{tpu_custom_call.1} parent=11 // pred_check
          %p237 = pneg %p144
        $region14: #{tpu_custom_call.1} parent=11 // pred_check_branch
          %239 = sbr.rel (%p237) target = $region16
        $region15: #{tpu_custom_call.1} parent=11 // pred_region
          %s240 = smul.u32 2, %s32
          %p241 = scmp.lt.s32.totalorder %s240, 1
          %s242 = scalar_select %p241, %s240, 1
          %s243 = smul.addr %s242, 8
          %s244 = scalar_lea.vmem %s3, %s243
          %s245 = smul.u32 2, %s32
        $region16: #{tpu_custom_call.1} parent=11 // pred_fallthru
          _
        // Predicated region
        $region17: #{tpu_custom_call.1} parent=11 // pred_check
          %p246 = pneg %p170
        $region18: #{tpu_custom_call.1} parent=11 // pred_check_branch
          %248 = sbr.rel (%p246) target = $region20
        $region19: #{tpu_custom_call.1} parent=11 // pred_region
          %p249 = scmp.lt.s32.totalorder %s32, 0
          %s250 = scalar_select %p249, %s32, 0
          %s251 = smul.addr %s250, 8
          %s252 = scalar_lea.vmem %s4, %s251
        $region20: #{tpu_custom_call.1} parent=11 // pred_fallthru
          _
      $region12: #{tpu_custom_call.1} parent=5 // pred_fallthru
        _
      %p253 = scmp.lt.s32.totalorder %s22, 2
      // Predicated region
      $region21: #{tpu_custom_call.1} parent=5 // pred_check
        %p254 = pneg %p253
      $region22: #{tpu_custom_call.1} parent=5 // pred_check_branch
        %256 = sbr.rel (%p254) target = $region24
      $region23: #{tpu_custom_call.1} parent=5 // pred_region
        // Predicated region
        $region25: #{tpu_custom_call.1} parent=23 // pred_check
          %p257 = pneg %p56
        $region26: #{tpu_custom_call.1} parent=23 // pred_check_branch
          %259 = sbr.rel (%p257) target = $region28
        $region27: #{tpu_custom_call.1} parent=23 // pred_region
          %s260 = sand.u32 %s46, 1
          %s261 = scalar_lea.sflag [#allocation5], %s260
          %s262 = sand.u32 %s46, 1
          %s263 = smul.addr %s262, 16
          %s264 = scalar_lea.vmem [#allocation4], %s263
          %s266 = ssub.s32 256, 256
          %267 = vsyncadd %s261, %s266
          %s268 = smul.addr %s29, 2
          %s269 = sadd.s32 %s30, %s268
          %s270 = smul.addr %s269, 128
          %s271 = scalar_lea.hbm %s0, %s270
          %s272 = sshll.u32 %s264, 4
          %s273 = int_to_ptr.vmem [resolvable:$true] %s272
          %278 = dma.hbm_to_vmem [thread:$0]  %s271, 256, %s273, %s261, 128, 128, 8
        $region28: #{tpu_custom_call.1} parent=23 // pred_fallthru
          _
        // Predicated region
        $region29: #{tpu_custom_call.1} parent=23 // pred_check
          %p279 = pneg %p84
        $region30: #{tpu_custom_call.1} parent=23 // pred_check_branch
          %281 = sbr.rel (%p279) target = $region32
        $region31: #{tpu_custom_call.1} parent=23 // pred_region
          %s282 = sand.u32 %s74, 1
          %s283 = scalar_lea.sflag [#allocation8], %s282
          %s284 = sand.u32 %s74, 1
          %s285 = smul.addr %s284, 16
          %s286 = scalar_lea.vmem [#allocation7], %s285
          %s287 = smul.u32 2, %s30
          %s289 = ssub.s32 256, 256
          %290 = vsyncadd %s283, %s289
          %s291 = smul.addr %s29, 2
          %s292 = sadd.s32 %s287, %s291
          %s293 = smul.addr %s292, 128
          %s294 = scalar_lea.hbm %s1, %s293
          %s295 = sshll.u32 %s286, 4
          %s296 = int_to_ptr.vmem [resolvable:$true] %s295
          %301 = dma.hbm_to_vmem [thread:$0]  %s294, 256, %s296, %s283, 128, 128, 8
        $region32: #{tpu_custom_call.1} parent=23 // pred_fallthru
          _
        // Predicated region
        $region33: #{tpu_custom_call.1} parent=23 // pred_check
          %p302 = pneg %p112
        $region34: #{tpu_custom_call.1} parent=23 // pred_check_branch
          %304 = sbr.rel (%p302) target = $region36
        $region35: #{tpu_custom_call.1} parent=23 // pred_region
          %p305 = scmp.lt.s32.totalorder %s29, 1
          %s306 = scalar_select %p305, %s29, 1
          %p307 = scmp.lt.s32.totalorder %s30, 0
          %s308 = scalar_select %p307, %s30, 0
          %s309 = sadd.s32 %s308, %s306
          %s310 = scalar_lea.vmem %s2, %s309
        $region36: #{tpu_custom_call.1} parent=23 // pred_fallthru
          _
      $region24: #{tpu_custom_call.1} parent=5 // pred_fallthru
        _
      %p311 = scmp.le.s32.totalorder 1, %s22
      %p312 = scmp.lt.s32.totalorder %s22, 3
      %p313 = pnand %p311, %p312
      %p314 = pneg %p313
      // Predicated region
      $region37: #{tpu_custom_call.1} parent=5 // pred_check
        _
      $region38: #{tpu_custom_call.1} parent=5 // pred_check_branch
        %316 = sbr.rel (%p313) target = $region40
      $region39: #{tpu_custom_call.1} parent=5 // pred_region
        %s317 = ssub.s32 %s22, 1
        %s318 = sand.u32 %s49, 1
        %s319 = scalar_lea.sflag [#allocation5], %s318
        %s320 = sand.u32 %s49, 1
        %s321 = smul.addr %s320, 16
        %s322 = scalar_lea.vmem [#allocation4], %s321
        // Predicated region
        $region41: #{tpu_custom_call.1} parent=39 // pred_check
          %p323 = pneg %p62
        $region42: #{tpu_custom_call.1} parent=39 // pred_check_branch
          %325 = sbr.rel (%p323) target = $region44
        $region43: #{tpu_custom_call.1} parent=39 // pred_region
          %326 = dma.done %s319, 256
        $region44: #{tpu_custom_call.1} parent=39 // pred_fallthru
          _
        %s327 = sand.u32 %s77, 1
        %s328 = scalar_lea.sflag [#allocation8], %s327
        %s329 = sand.u32 %s77, 1
        %s330 = smul.addr %s329, 16
        %s331 = scalar_lea.vmem [#allocation7], %s330
        // Predicated region
        $region45: #{tpu_custom_call.1} parent=39 // pred_check
          %p332 = pneg %p90
        $region46: #{tpu_custom_call.1} parent=39 // pred_check_branch
          %334 = sbr.rel (%p332) target = $region48
        $region47: #{tpu_custom_call.1} parent=39 // pred_region
          %335 = dma.done %s328, 256
        $region48: #{tpu_custom_call.1} parent=39 // pred_fallthru
          _
        %s336 = sand.u32 %s49, 1
        %s337 = scalar_lea.sflag [#allocation5], %s336
        %s338 = sand.u32 %s49, 1
        %s339 = smul.addr %s338, 16
        %s340 = scalar_lea.vmem [#allocation4], %s339
        %p341 = pneg %p62
        %p342 = pneg %p59
        %s343 = sand.u32 %s77, 1
        %s344 = scalar_lea.sflag [#allocation8], %s343
        %s345 = sand.u32 %s77, 1
        %s346 = smul.addr %s345, 16
        %s347 = scalar_lea.vmem [#allocation7], %s346
        %p348 = pneg %p90
        %p349 = pneg %p87
        %p350 = scmp.lt.s32.totalorder %s31, 1
        %s351 = scalar_select %p350, %s31, 1
        %p352 = scmp.lt.s32.totalorder %s32, 0
        %s353 = scalar_select %p352, %s32, 0
        %s354 = sadd.s32 %s353, %s351
        %s355 = scalar_lea.vmem %s2, %s354
        %p356 = pneg %p118
        %p357 = pneg %p115
        %s358 = smul.u32 2, %s32
        %p359 = scmp.lt.s32.totalorder %s358, 1
        %s360 = scalar_select %p359, %s358, 1
        %s361 = smul.addr %s360, 8
        %s362 = scalar_lea.vmem %s3, %s361
        %p363 = pneg %p144
        %p364 = pneg %p141
        %p365 = scmp.lt.s32.totalorder %s32, 0
        %s366 = scalar_select %p365, %s32, 0
        %s367 = smul.addr %s366, 8
        %s368 = scalar_lea.vmem %s4, %s367
        %p369 = pneg %p170
        %p370 = pneg %p167
        %p371 = pneg %p196
        %p372 = pneg %p193
        %p373 = scmp.lt.s32.totalorder %s31, 1
        %s374 = scalar_select %p373, %s31, 1
        %s375 = smul.addr %s374, 2
        %s376 = smul.addr %s375, 8
        %s377 = scalar_lea.vmem %s5, %s376
        %p378 = pneg %p222
        %p379 = pneg %p219
        %s380 = sand.u32 %s209, 1
        %s381 = scalar_lea.sflag [#allocation6], %s380
        %s382 = sand.u32 %s209, 1
        %s383 = smul.addr %s382, 8
        %s384 = scalar_lea.vmem [#allocation9], %s383
        %s385 = smul.u32 2, %s32
        %p386 = scmp.lt.s32.totalorder %s31, 1
        %s387 = scalar_select %p386, %s31, 1
        %p388 = scmp.lt.s32.totalorder %s32, 0
        %s389 = scalar_select %p388, %s32, 0
        %s390 = sadd.s32 %s389, %s387
        %s391 = scalar_lea.vmem %s2, %s390
        %s392 = smul.u32 2, %s32
        %p393 = scmp.lt.s32.totalorder %s392, 1
        %s394 = scalar_select %p393, %s392, 1
        %s395 = smul.addr %s394, 8
        %s396 = scalar_lea.vmem %s3, %s395
        %s397 = smul.u32 2, %s32
        %p398 = scmp.lt.s32.totalorder %s32, 0
        %s399 = scalar_select %p398, %s32, 0
        %s400 = smul.addr %s399, 8
        %s401 = scalar_lea.vmem %s4, %s400
        %p402 = scmp.lt.s32.totalorder %s31, 1
        %s403 = scalar_select %p402, %s31, 1
        %s404 = smul.addr %s403, 2
        %s405 = smul.addr %s404, 8
        %s406 = scalar_lea.vmem %s5, %s405
        %p407 = scmp.eq.s32.totalorder %s32, 0
        // Predicated region
        $region49: #{tpu_custom_call.1} parent=39 // pred_check
          %p408 = pneg %p407
        $region50: #{tpu_custom_call.1} parent=39 // pred_check_branch
          %410 = sbr.rel (%p408) target = $region52
        $region51: #{tpu_custom_call.1} parent=39 // pred_region
          %vm411 = vcmask 64512
          %412 = vst.msk [vmem:[#allocation2] sm:$0xff] %vm411, 0.0
          %413 = vst.msk [vmem:[#allocation2 + $0x8] sm:$0xff] %vm411, 0.0
          %vm414 = vcmask 130048
          %415 = vst.msk [vmem:[#allocation3] sm:$0xff] %vm414, 0.0
        $region52: #{tpu_custom_call.1} parent=39 // pred_fallthru
          _
        %v416 = vld [vmem:[%s391] sm:$0x1]
        %v417 = vld [vmem:[%s322] sm:$0xff]
        %v418 = vld [vmem:[%s322 + $0x8] sm:$0xff]
        %v420 = vlaneseq
        %v421 = vshrl.u32 %v420, 7
        %v422 = vsub.s32 0, %v421
        %v423 = vrot.slane %v416, %v422
        %v425 = vmul.f32 %v417, %v423
        %v426 = vmul.f32 %v418, %v423
        %v427 = vld [vmem:[%s401] sm:$0xff]
        %v428 = vmul.f32 %v427, %v423
        %v429 = vld [vmem:[#allocation2] sm:$0xff]
        %v430 = vld [vmem:[#allocation2 + $0x8] sm:$0xff]
        %v431 = vld [vmem:[%s396] sm:$0xff]
        %v432 = vld [vmem:[%s396 + $0x8] sm:$0xff]
        %vm433 = vcmask 130048
        %v435 = vsel %vm433, %v425, 0
        %v438 = vsel %vm433, %v426, 0
        %440 = vmatprep.subr.mxu0 0.0
        %441 = vmatpush1.msra.mxu0 0.0
        %442 = vmatprep.subr.mxu0 0.0
        %443 = vmatpush1.msra.mxu0 0.0
        %444 = vmatprep.subr.mxu0 0.0
        %445 = vmatpush1.msra.mxu0 0.0
        %446 = vmatprep.subr.mxu0 0.0
        %447 = vmatpush1.msra.mxu0 0.0
        %448 = vmatprep.subr.mxu0 0.0
        %449 = vmatpush1.msra.mxu0 0.0
        %450 = vmatprep.subr.mxu0 0.0
        %451 = vmatpush1.msra.mxu0 0.0
        %452 = vmatprep.subr.mxu0 0.0
        %453 = vmatpush1.msra.mxu0 0.0
        %454 = vmatprep.subr.mxu0 0.0
        %455 = vmatpush1.msra.mxu0 0.0
        %456 = vmatprep.subr.mxu0 0.0
        %457 = vmatpush1.msra.mxu0 0.0
        %458 = vmatprep.subr.mxu0 0.0
        %459 = vmatpush1.msra.mxu0 0.0
        %460 = vmatprep.subr.mxu0 0.0
        %461 = vmatpush1.msra.mxu0 0.0
        %462 = vmatprep.subr.mxu0 0.0
        %463 = vmatpush1.msra.mxu0 0.0
        %464 = vmatprep.subr.mxu0 0.0
        %465 = vmatpush1.msra.mxu0 0.0
        %466 = vmatprep.subr.mxu0 0.0
        %467 = vmatpush1.msra.mxu0 0.0
        %468 = vmatprep.subr.mxu0 0.0
        %469 = vmatpush1.msra.mxu0 %v432
        %470 = vmatprep.subr.mxu0 0.0
        %471 = vmatpush1.msra.mxu0 %v431
        %472 = vmatprep.subr.mxu0 0.0
        %473 = vmatpush2.msra.mxu0 0.0
        %474 = vmatprep.subr.mxu0 0.0
        %475 = vmatpush2.msra.mxu0 0.0
        %476 = vmatprep.subr.mxu0 0.0
        %477 = vmatpush2.msra.mxu0 0.0
        %478 = vmatprep.subr.mxu0 0.0
        %479 = vmatpush2.msra.mxu0 0.0
        %480 = vmatprep.subr.mxu0 0.0
        %481 = vmatpush2.msra.mxu0 0.0
        %482 = vmatprep.subr.mxu0 0.0
        %483 = vmatpush2.msra.mxu0 0.0
        %484 = vmatprep.subr.mxu0 0.0
        %485 = vmatpush2.msra.mxu0 0.0
        %486 = vmatprep.subr.mxu0 0.0
        %487 = vmatpush2.msra.mxu0 0.0
        %488 = vmatprep.subr.mxu0 0.0
        %489 = vmatpush2.msra.mxu0 0.0
        %490 = vmatprep.subr.mxu0 0.0
        %491 = vmatpush2.msra.mxu0 0.0
        %492 = vmatprep.subr.mxu0 0.0
        %493 = vmatpush2.msra.mxu0 0.0
        %494 = vmatprep.subr.mxu0 0.0
        %495 = vmatpush2.msra.mxu0 0.0
        %496 = vmatprep.subr.mxu0 0.0
        %497 = vmatpush2.msra.mxu0 0.0
        %498 = vmatprep.subr.mxu0 0.0
        %499 = vmatpush2.msra.mxu0 0.0
        %500 = vmatprep.subr.mxu0 0.0
        %501 = vmatpush2.msra.mxu0 0.0
        %502 = vmatprep.subr.mxu0 0.0
        %503 = vmatpush2.msra.mxu0 0.0
        %504 = vmatprep.mubr.f32.mxu0 0.0
        %505 = vmatmul.mubr.f32.gmra.mxu0 %v435
        %v506 = vpop.f32.mrf.mxu0
        %v507 = vadd.f32 0.0, %v506
        %v508 = vpop.f32.mrf.mxu0
        %509 = vmatprep.mubr.f32.mxu0 0.0
        %510 = vmatmul.mubr.f32.gmra.mxu0 %v438
        %v511 = vpop.f32.mrf.mxu0
        %v512 = vadd.f32 0.0, %v511
        %v513 = vpop.f32.mrf.mxu0
        %514 = vdwg.mxu0
        %v515 = vadd.f32 %v429, %v507
        %v516 = vadd.f32 %v430, %v512
        %vm517 = vcmask 64512
        %518 = vst.msk [vmem:[#allocation2] sm:$0xff] %vm517, %v515
        %519 = vst.msk [vmem:[#allocation2 + $0x8] sm:$0xff] %vm517, %v516
        %v520 = vld [vmem:[#allocation3] sm:$0xff]
        %v521 = vld [vmem:[%s331] sm:$0xff]
        %v522 = vld [vmem:[%s331 + $0x8] sm:$0xff]
        %v524 = vsel %vm433, %v428, 0
        %526 = vmatprep.subr.mxu0 0.0
        %527 = vmatpush1.msra.mxu0 0.0
        %528 = vmatprep.subr.mxu0 0.0
        %529 = vmatpush1.msra.mxu0 0.0
        %530 = vmatprep.subr.mxu0 0.0
        %531 = vmatpush1.msra.mxu0 0.0
        %532 = vmatprep.subr.mxu0 0.0
        %533 = vmatpush1.msra.mxu0 0.0
        %534 = vmatprep.subr.mxu0 0.0
        %535 = vmatpush1.msra.mxu0 0.0
        %536 = vmatprep.subr.mxu0 0.0
        %537 = vmatpush1.msra.mxu0 0.0
        %538 = vmatprep.subr.mxu0 0.0
        %539 = vmatpush1.msra.mxu0 0.0
        %540 = vmatprep.subr.mxu0 0.0
        %541 = vmatpush1.msra.mxu0 0.0
        %542 = vmatprep.subr.mxu0 0.0
        %543 = vmatpush1.msra.mxu0 0.0
        %544 = vmatprep.subr.mxu0 0.0
        %545 = vmatpush1.msra.mxu0 0.0
        %546 = vmatprep.subr.mxu0 0.0
        %547 = vmatpush1.msra.mxu0 0.0
        %548 = vmatprep.subr.mxu0 0.0
        %549 = vmatpush1.msra.mxu0 0.0
        %550 = vmatprep.subr.mxu0 0.0
        %551 = vmatpush1.msra.mxu0 0.0
        %552 = vmatprep.subr.mxu0 0.0
        %553 = vmatpush1.msra.mxu0 0.0
        %554 = vmatprep.subr.mxu0 0.0
        %555 = vmatpush1.msra.mxu0 %v522
        %556 = vmatprep.subr.mxu0 0.0
        %557 = vmatpush1.msra.mxu0 %v521
        %558 = vmatprep.subr.mxu0 0.0
        %559 = vmatpush2.msra.mxu0 0.0
        %560 = vmatprep.subr.mxu0 0.0
        %561 = vmatpush2.msra.mxu0 0.0
        %562 = vmatprep.subr.mxu0 0.0
        %563 = vmatpush2.msra.mxu0 0.0
        %564 = vmatprep.subr.mxu0 0.0
        %565 = vmatpush2.msra.mxu0 0.0
        %566 = vmatprep.subr.mxu0 0.0
        %567 = vmatpush2.msra.mxu0 0.0
        %568 = vmatprep.subr.mxu0 0.0
        %569 = vmatpush2.msra.mxu0 0.0
        %570 = vmatprep.subr.mxu0 0.0
        %571 = vmatpush2.msra.mxu0 0.0
        %572 = vmatprep.subr.mxu0 0.0
        %573 = vmatpush2.msra.mxu0 0.0
        %574 = vmatprep.subr.mxu0 0.0
        %575 = vmatpush2.msra.mxu0 0.0
        %576 = vmatprep.subr.mxu0 0.0
        %577 = vmatpush2.msra.mxu0 0.0
        %578 = vmatprep.subr.mxu0 0.0
        %579 = vmatpush2.msra.mxu0 0.0
        %580 = vmatprep.subr.mxu0 0.0
        %581 = vmatpush2.msra.mxu0 0.0
        %582 = vmatprep.subr.mxu0 0.0
        %583 = vmatpush2.msra.mxu0 0.0
        %584 = vmatprep.subr.mxu0 0.0
        %585 = vmatpush2.msra.mxu0 0.0
        %586 = vmatprep.subr.mxu0 0.0
        %587 = vmatpush2.msra.mxu0 0.0
        %588 = vmatprep.subr.mxu0 0.0
        %589 = vmatpush2.msra.mxu0 0.0
        %590 = vmatprep.mubr.f32.mxu0 0.0
        %591 = vmatmul.mubr.f32.gmra.mxu0 %v524
        %v592 = vpop.f32.mrf.mxu0
        %v593 = vadd.f32 0.0, %v592
        %v594 = vpop.f32.mrf.mxu0
        %595 = vdwg.mxu0
        %v596 = vadd.f32 %v520, %v593
        %597 = vst.msk [vmem:[#allocation3] sm:$0xff] %vm433, %v596
        // Predicated region
        $region53: #{tpu_custom_call.1} parent=39 // pred_check
          %p598 = pneg %p407
        $region54: #{tpu_custom_call.1} parent=39 // pred_check_branch
          %600 = sbr.rel (%p598) target = $region56
        $region55: #{tpu_custom_call.1} parent=39 // pred_region
          %v601 = vld [vmem:[#allocation2] sm:$0xff]
          %v602 = vld [vmem:[#allocation2 + $0x8] sm:$0xff]
          %603 = vst.msk [vmem:[%s406] sm:$0xff] %vm517, %v601
          %604 = vst.msk [vmem:[%s406 + $0x8] sm:$0xff] %vm517, %v602
          %v605 = vld [vmem:[#allocation3] sm:$0xff]
          %606 = vst.msk [vmem:[%s384] sm:$0xff] %vm433, %v605
        $region56: #{tpu_custom_call.1} parent=39 // pred_fallthru
          _
        %p607 = scmp.lt.s32.totalorder %s31, 1
        %s608 = scalar_select %p607, %s31, 1
        %s609 = smul.addr %s608, 2
        %s610 = smul.addr %s609, 8
        %s611 = scalar_lea.vmem %s5, %s610
        %s612 = sand.u32 %s209, 1
        %s613 = scalar_lea.sflag [#allocation6], %s612
        %s614 = sand.u32 %s209, 1
        %s615 = smul.addr %s614, 8
        %s616 = scalar_lea.vmem [#allocation9], %s615
        // Predicated region
        $region57: #{tpu_custom_call.1} parent=39 // pred_check
          %p617 = pneg %p193
        $region58: #{tpu_custom_call.1} parent=39 // pred_check_branch
          %619 = sbr.rel (%p617) target = $region60
        $region59: #{tpu_custom_call.1} parent=39 // pred_region
          _
        $region60: #{tpu_custom_call.1} parent=39 // pred_fallthru
          _
        // Predicated region
        $region61: #{tpu_custom_call.1} parent=39 // pred_check
          %p620 = pneg %p219
        $region62: #{tpu_custom_call.1} parent=39 // pred_check_branch
          %622 = sbr.rel (%p620) target = $region64
        $region63: #{tpu_custom_call.1} parent=39 // pred_region
          %s624 = ssub.s32 128, 128
          %625 = vsyncadd %s613, %s624
          %s626 = smul.addr %s31, 128
          %s627 = scalar_lea.hbm %s6, %s626
          %s629 = sshll.u32 %s616, 4
          %s630 = int_to_ptr.vmem [resolvable:$true] %s629
          %632 = dma.vmem_to_hbm [thread:$0]  %s630, 128, %s627, %s613
        $region64: #{tpu_custom_call.1} parent=39 // pred_fallthru
          _
      $region40: #{tpu_custom_call.1} parent=5 // pred_fallthru
        _
      %p633 = scmp.le.s32.totalorder 2, %s22
      // Predicated region
      $region65: #{tpu_custom_call.1} parent=5 // pred_check
        %p634 = pneg %p633
      $region66: #{tpu_custom_call.1} parent=5 // pred_check_branch
        %636 = sbr.rel (%p634) target = $region68
      $region67: #{tpu_custom_call.1} parent=5 // pred_region
        %s637 = ssub.s32 %s22, 2
        // Predicated region
        $region69: #{tpu_custom_call.1} parent=67 // pred_check
          %p638 = pneg %p199
        $region70: #{tpu_custom_call.1} parent=67 // pred_check_branch
          %640 = sbr.rel (%p638) target = $region72
        $region71: #{tpu_custom_call.1} parent=67 // pred_region
          %p641 = scmp.lt.s32.totalorder %s33, 1
          %s642 = scalar_select %p641, %s33, 1
          %s643 = smul.addr %s642, 2
          %s644 = smul.addr %s643, 8
          %s645 = scalar_lea.vmem %s5, %s644
        $region72: #{tpu_custom_call.1} parent=67 // pred_fallthru
          _
        // Predicated region
        $region73: #{tpu_custom_call.1} parent=67 // pred_check
          %p646 = pneg %p225
        $region74: #{tpu_custom_call.1} parent=67 // pred_check_branch
          %648 = sbr.rel (%p646) target = $region76
        $region75: #{tpu_custom_call.1} parent=67 // pred_region
          %s649 = sand.u32 %s210, 1
          %s650 = scalar_lea.sflag [#allocation6], %s649
          %s651 = sand.u32 %s210, 1
          %s652 = smul.addr %s651, 8
          %s653 = scalar_lea.vmem [#allocation9], %s652
          %654 = dma.done %s650, 128
        $region76: #{tpu_custom_call.1} parent=67 // pred_fallthru
          _
      $region68: #{tpu_custom_call.1} parent=5 // pred_fallthru
        _
    $region6: #{tpu_custom_call.1} parent=1 // loop_footer
      %s26 = sadd.s32 1, %s22
    $region7: #{tpu_custom_call.1} parent=1 // loop_footer_branch
      %21 = sbr.rel target = $region3
    $region8: #{tpu_custom_call.1} parent=1 // loop_exit
      _
    %655 = vsyncpa [#allocation5], 1
    %s656 = scalar_lea.sflag [#allocation5], 1
    %657 = vsyncpa %s656, 1
    %658 = vsyncpa [#allocation8], 1
    %s659 = scalar_lea.sflag [#allocation8], 1
    %660 = vsyncpa %s659, 1
    %661 = vsyncpa [#allocation6], 1
    %s662 = scalar_lea.sflag [#allocation6], 1
    %663 = vsyncpa %s662, 1

</llo_original>
